<compile_context>
chip_gen: v7x
topology: tpu7x:2x2x1
jax: 0.10.0
libtpu: 0.0.40
codegen_flags: <defaults>
</compile_context>

<pallas_src>
import functools

import jax
import jax.numpy as jnp
from jax.experimental import pallas as pl
from jax.experimental.pallas import tpu as pltpu


def _round_up(x, m):
    return ((x + m - 1) // m) * m


def _next_pow2(x):
    return 1 << (max(1, x) - 1).bit_length()


def _min_grid_steps():
    """>=4 parallel grid steps on multi-TensorCore chips (v7x); 1 otherwise."""
    try:
        kind = jax.devices()[0].device_kind.lower()
    except Exception:
        return 1
    return 4 if "v7" in kind else 1


def _choose_grid(b_bucket, max_tile, min_steps):
    """b_bucket is a power of two >= 8; pick a power-of-two step count so the
    tile is a multiple of 8 and divides the bucket exactly."""
    desired = max(min_steps, pl.cdiv(b_bucket, max_tile))
    steps = _next_pow2(desired)
    steps = max(1, min(steps, b_bucket // 8))   # keep tile >= 8 rows
    return b_bucket // steps, steps


def _actor_kernel(action_dim, obs_ref, lat_ref,
                  w1o_ref, w1l_ref, b1_ref, w2_ref, b2_ref, w3_ref, b3_ref,
                  out_ref):
    """MLP trunk + masked logsumexp for one batch tile.

    obs_ref: (TB, obs_dim)    lat_ref: (TB, lat_dim)
    w1o_ref: (obs_dim, H1)    w1l_ref: (lat_dim, H1)   b1_ref: (1, H1)
    w2_ref:  (H1, H2)         b2_ref:  (1, H2)
    w3_ref:  (H2, A_pad)      b3_ref:  (1, A_pad)      (zero-padded past A)
    out_ref: (TB, A_pad) packed: lanes [0:A] = logits, lanes [A:] = lse.
    """
    # Fused concat: [obs, lat] @ w1 == obs @ w1[:obs] + lat @ w1[obs:]
    h1 = jnp.dot(obs_ref[...], w1o_ref[...], preferred_element_type=jnp.float32)
    h1 = h1 + jnp.dot(lat_ref[...], w1l_ref[...], preferred_element_type=jnp.float32)
    h1 = jnp.maximum(h1 + b1_ref[...], 0.0)

    h2 = jnp.dot(h1, w2_ref[...], preferred_element_type=jnp.float32) + b2_ref[...]
    h2 = jnp.maximum(h2, 0.0)

    logits = jnp.dot(h2, w3_ref[...], preferred_element_type=jnp.float32) + b3_ref[...]

    # logsumexp restricted to the real (unpadded) action lanes.
    lane = jax.lax.broadcasted_iota(jnp.int32, logits.shape, 1)
    valid = lane < action_dim
    masked = jnp.where(valid, logits, jnp.float32(-1e30))
    m = jnp.max(masked, axis=-1, keepdims=True)
    lse = m + jnp.log(jnp.sum(jnp.exp(masked - m), axis=-1, keepdims=True))

    # Single lane-dense store: logits in the real lanes, lse everywhere else.
    out_ref[...] = jnp.where(valid, logits, lse)


@functools.partial(jax.jit, static_argnames=("action_dim", "tile_b"))
def _forward_padded(obs_p, lat_p, w1_obs, w1_lat, b1, w2, b2, w3p, b3p,
                    *, action_dim, tile_b):
    """obs_p/lat_p already padded to a power-of-two bucket.  Returns
    (logits, log_probs) of shape (B_bucket, action_dim)."""
    b_bucket, obs_dim = obs_p.shape
    lat_dim = lat_p.shape[1]
    h1 = w2.shape[0]
    h2 = w2.shape[1]
    a_pad = w3p.shape[1]
    grid = (b_bucket // tile_b,)

    # Constant index_map -> weights/biases stay VMEM-resident across the grid.
    # (A pipeline_mode=pl.Buffered(1) hint would drop their second buffer;
    # at a few KB of f32 it is immaterial, so we keep the default.)
    full = lambda shape: pl.BlockSpec(shape, lambda i: (0, 0))

    packed = pl.pallas_call(
        functools.partial(_actor_kernel, action_dim),
        out_shape=jax.ShapeDtypeStruct((b_bucket, a_pad), jnp.float32),
        grid_spec=pltpu.PrefetchScalarGridSpec(
            num_scalar_prefetch=0,
            grid=grid,
            in_specs=[
                pl.BlockSpec((tile_b, obs_dim), lambda i: (i, 0)),
                pl.BlockSpec((tile_b, lat_dim), lambda i: (i, 0)),
                full((obs_dim, h1)), full((lat_dim, h1)), full((1, h1)),
                full((h1, h2)), full((1, h2)),
                full((h2, a_pad)), full((1, a_pad)),
            ],
            out_specs=pl.BlockSpec((tile_b, a_pad), lambda i: (i, 0)),
        ),
        compiler_params=pltpu.CompilerParams(
            dimension_semantics=("parallel",)),
    )(obs_p, lat_p, w1_obs, w1_lat, b1, w2, b2, w3p, b3p)

    # Unpack inside the same jit so the 128-lane slab never round-trips
    # un-fused through the wrapper.
    logits = packed[:, :action_dim]
    lse = packed[:, action_dim:action_dim + 1]
    return logits, logits - lse


class SoftDiscreteOptionActorPallas:
    """JAX/Pallas port of SoftDiscreteOptionActor (deterministic forward)."""

    def __init__(self, obs_dim, action_dim, lat_dim,
                 hidden_policy=(32, 32), gumbel_temperature=1.0, seed=0):
        self.obs_dim = obs_dim
        self.action_dim = action_dim
        self.lat_dim = lat_dim
        self.temperature = gumbel_temperature
        h1, h2 = hidden_policy
        input_dim = obs_dim + lat_dim

        # Lane-dense output width (A padded up to a multiple of 128).
        self.a_pad = _round_up(action_dim, 128)
        self._min_steps = _min_grid_steps()

        # Deterministic parameter init (stand-in for torch weight_init).
        key = jax.random.PRNGKey(seed)
        k1, k2, k3 = jax.random.split(key, 3)
        s = 0.1
        w1 = (s * jax.random.normal(k1, (input_dim, h1))).astype(jnp.float32)
        # Pre-split w1 so the kernel fuses the obs/lat concat into two dots.
        self.w1_obs = w1[:obs_dim]
        self.w1_lat = w1[obs_dim:]
        self.b1 = jnp.zeros((1, h1), jnp.float32)
        self.w2 = (s * jax.random.normal(k2, (h1, h2))).astype(jnp.float32)
        self.b2 = jnp.zeros((1, h2), jnp.float32)
        w3 = (s * jax.random.normal(k3, (h2, action_dim))).astype(jnp.float32)
        # Zero-pad the output layer to the lane-dense width (extra MXU columns
        # are free; padded logits are overwritten by lse in the kernel anyway).
        self.w3p = jnp.zeros((h2, self.a_pad), jnp.float32).at[:, :action_dim].set(w3)
        self.b3p = jnp.zeros((1, self.a_pad), jnp.float32)

    def forward(self, obs, lat, max_tile_b=2048):
        obs = jnp.asarray(obs, jnp.float32)
        lat = jnp.asarray(lat, jnp.float32)
        B = obs.shape[0]

        # Bucket the batch to a power of two so varying rollout batch sizes
        # hit a small fixed set of Mosaic/XLA compiles.
        b_bucket = max(8, _next_pow2(B))
        tile_b, _ = _choose_grid(b_bucket, max_tile_b, self._min_steps)
        if b_bucket != B:
            pad = b_bucket - B
            obs = jnp.pad(obs, ((0, pad), (0, 0)))
            lat = jnp.pad(lat, ((0, pad), (0, 0)))

        logits_b, logp_b = _forward_padded(
            obs, lat, self.w1_obs, self.w1_lat, self.b1,
            self.w2, self.b2, self.w3p, self.b3p,
            action_dim=self.action_dim, tile_b=tile_b)

        # Row slice on tiny (B_bucket, A) arrays -- negligible traffic.
        return logits_b[:B], logp_b[:B]

    def exploit(self, obs, lat):
        logits, _ = self.forward(obs, lat)
        return jnp.argmax(logits, axis=-1)

    # TODO(synk): rsample/sample need Gumbel noise + straight-through estimator;
    # only the deterministic forward hot path is implemented as a Pallas kernel.


def _reference_forward(actor, obs, lat):
    x = jnp.concatenate([obs, lat], axis=-1).astype(jnp.float32)
    w1 = jnp.concatenate([actor.w1_obs, actor.w1_lat], axis=0)
    h1 = jnp.maximum(x @ w1 + actor.b1, 0.0)
    h2 = jnp.maximum(h1 @ actor.w2 + actor.b2, 0.0)
    w3 = actor.w3p[:, :actor.action_dim]
    b3 = actor.b3p[:, :actor.action_dim]
    logits = h2 @ w3 + b3
    logp = logits - jax.scipy.special.logsumexp(logits, axis=-1, keepdims=True)
    return logits, logp


if __name__ == "__main__":
    B, OBS, LAT, ACT = 8, 24, 8, 4
    actor = SoftDiscreteOptionActorPallas(
        obs_dim=OBS, action_dim=ACT, lat_dim=LAT,
        hidden_policy=(32, 32), gumbel_temperature=1.0, seed=0)

    key = jax.random.PRNGKey(0)
    k_obs, k_lat = jax.random.split(key)
    obs = jax.random.normal(k_obs, (B, OBS), jnp.float32)
    lat = jax.random.normal(k_lat, (B, LAT), jnp.float32)

    logits, log_probs = actor.forward(obs, lat)
    jax.block_until_ready((logits, log_probs))
    assert logits.shape == (B, ACT) and log_probs.shape == (B, ACT)

    ref_logits, ref_logp = _reference_forward(actor, obs, lat)
    assert jnp.allclose(logits, ref_logits, atol=1e-5, rtol=1e-5)
    assert jnp.allclose(log_probs, ref_logp, atol=1e-5, rtol=1e-5)

    # Ragged batch: bucketed padding (200 -> 256) plus a forced multi-step
    # grid (max_tile_b=64 -> 4 "parallel" steps) to exercise the tiled path.
    B2 = 200
    k2o, k2l = jax.random.split(jax.random.PRNGKey(1))
    obs2 = jax.random.normal(k2o, (B2, OBS), jnp.float32)
    lat2 = jax.random.normal(k2l, (B2, LAT), jnp.float32)
    logits2, logp2 = actor.forward(obs2, lat2, max_tile_b=64)
    jax.block_until_ready((logits2, logp2))
    ref2_logits, ref2_logp = _reference_forward(actor, obs2, lat2)
    assert logits2.shape == (B2, ACT) and logp2.shape == (B2, ACT)
    assert jnp.allclose(logits2, ref2_logits, atol=1e-5, rtol=1e-5)
    assert jnp.allclose(logp2, ref2_logp, atol=1e-5, rtol=1e-5)

    greedy = actor.exploit(obs, lat)
    jax.block_until_ready(greedy)
    assert greedy.shape == (B,)

    print("KERNEL_OK")
</pallas_src>

<mosaic_0001>
module attributes {stable_mosaic.version = 11 : i64} {
  func.func @_actor_kernel(%arg0: i32, %arg1: memref<8x24xf32, #tpu.memory_space<vmem>>, %arg2: memref<8x8xf32, #tpu.memory_space<vmem>>, %arg3: memref<24x32xf32, #tpu.memory_space<vmem>>, %arg4: memref<8x32xf32, #tpu.memory_space<vmem>>, %arg5: memref<1x32xf32, #tpu.memory_space<vmem>>, %arg6: memref<32x32xf32, #tpu.memory_space<vmem>>, %arg7: memref<1x32xf32, #tpu.memory_space<vmem>>, %arg8: memref<32x128xf32, #tpu.memory_space<vmem>>, %arg9: memref<1x128xf32, #tpu.memory_space<vmem>>, %arg10: memref<8x128xf32, #tpu.memory_space<vmem>>) attributes {dimension_semantics = [#tpu.dimension_semantics<parallel>], iteration_bounds = array<i64: 1>, scalar_prefetch = 0 : i64, scratch_operands = 0 : i64, tpu.core_type = #tpu.core_type<tc>, window_params = [{transform_indices = @transform_0, window_bounds = array<i64: 8, 24>}, {transform_indices = @transform_1, window_bounds = array<i64: 8, 8>}, {pipeline_mode = #tpu.pipeline_mode<synchronous>, transform_indices = @transform_2, window_bounds = array<i64: 24, 32>}, {pipeline_mode = #tpu.pipeline_mode<synchronous>, transform_indices = @transform_3, window_bounds = array<i64: 8, 32>}, {pipeline_mode = #tpu.pipeline_mode<synchronous>, transform_indices = @transform_4, window_bounds = array<i64: 1, 32>}, {pipeline_mode = #tpu.pipeline_mode<synchronous>, transform_indices = @transform_5, window_bounds = array<i64: 32, 32>}, {pipeline_mode = #tpu.pipeline_mode<synchronous>, transform_indices = @transform_6, window_bounds = array<i64: 1, 32>}, {pipeline_mode = #tpu.pipeline_mode<synchronous>, transform_indices = @transform_7, window_bounds = array<i64: 32, 128>}, {pipeline_mode = #tpu.pipeline_mode<synchronous>, transform_indices = @transform_8, window_bounds = array<i64: 1, 128>}, {transform_indices = @transform_9, window_bounds = array<i64: 8, 128>}]} {
    %c0 = arith.constant 0 : index
    %c0_0 = arith.constant 0 : index
    %0 = vector.load %arg1[%c0, %c0_0] : memref<8x24xf32, #tpu.memory_space<vmem>>, vector<8x24xf32>
    %c0_1 = arith.constant 0 : index
    %c0_2 = arith.constant 0 : index
    %1 = vector.load %arg3[%c0_1, %c0_2] : memref<24x32xf32, #tpu.memory_space<vmem>>, vector<24x32xf32>
    %cst = arith.constant dense<0.000000e+00> : vector<8x32xf32>
    %2 = tpu.matmul %0, %1, %cst {dimension_numbers = #tpu.dot_dimension_numbers<[1], [0], [0], [1], [0, 0, 1, 1], [], []>} : vector<8x24xf32>, vector<24x32xf32>, vector<8x32xf32> -> vector<8x32xf32>
    %c0_3 = arith.constant 0 : index
    %c0_4 = arith.constant 0 : index
    %3 = vector.load %arg2[%c0_3, %c0_4] : memref<8x8xf32, #tpu.memory_space<vmem>>, vector<8x8xf32>
    %c0_5 = arith.constant 0 : index
    %c0_6 = arith.constant 0 : index
    %4 = vector.load %arg4[%c0_5, %c0_6] : memref<8x32xf32, #tpu.memory_space<vmem>>, vector<8x32xf32>
    %cst_7 = arith.constant dense<0.000000e+00> : vector<8x32xf32>
    %5 = tpu.matmul %3, %4, %cst_7 {dimension_numbers = #tpu.dot_dimension_numbers<[1], [0], [0], [1], [0, 0, 1, 1], [], []>} : vector<8x8xf32>, vector<8x32xf32>, vector<8x32xf32> -> vector<8x32xf32>
    %6 = arith.addf %2, %5 : vector<8x32xf32>
    %c0_8 = arith.constant 0 : index
    %c0_9 = arith.constant 0 : index
    %7 = vector.load %arg5[%c0_8, %c0_9] : memref<1x32xf32, #tpu.memory_space<vmem>>, vector<1x32xf32>
    %8 = vector.broadcast %7 : vector<1x32xf32> to vector<8x32xf32>
    %9 = arith.addf %6, %8 : vector<8x32xf32>
    %cst_10 = arith.constant 0.000000e+00 : f32
    %10 = vector.broadcast %cst_10 : f32 to vector<8x32xf32>
    %11 = arith.maximumf %9, %10 : vector<8x32xf32>
    %c0_11 = arith.constant 0 : index
    %c0_12 = arith.constant 0 : index
    %12 = vector.load %arg6[%c0_11, %c0_12] : memref<32x32xf32, #tpu.memory_space<vmem>>, vector<32x32xf32>
    %cst_13 = arith.constant dense<0.000000e+00> : vector<8x32xf32>
    %13 = tpu.matmul %11, %12, %cst_13 {dimension_numbers = #tpu.dot_dimension_numbers<[1], [0], [0], [1], [0, 0, 1, 1], [], []>} : vector<8x32xf32>, vector<32x32xf32>, vector<8x32xf32> -> vector<8x32xf32>
    %c0_14 = arith.constant 0 : index
    %c0_15 = arith.constant 0 : index
    %14 = vector.load %arg7[%c0_14, %c0_15] : memref<1x32xf32, #tpu.memory_space<vmem>>, vector<1x32xf32>
    %15 = vector.broadcast %14 : vector<1x32xf32> to vector<8x32xf32>
    %16 = arith.addf %13, %15 : vector<8x32xf32>
    %cst_16 = arith.constant 0.000000e+00 : f32
    %17 = vector.broadcast %cst_16 : f32 to vector<8x32xf32>
    %18 = arith.maximumf %16, %17 : vector<8x32xf32>
    %c0_17 = arith.constant 0 : index
    %c0_18 = arith.constant 0 : index
    %19 = vector.load %arg8[%c0_17, %c0_18] : memref<32x128xf32, #tpu.memory_space<vmem>>, vector<32x128xf32>
    %cst_19 = arith.constant dense<0.000000e+00> : vector<8x128xf32>
    %20 = tpu.matmul %18, %19, %cst_19 {dimension_numbers = #tpu.dot_dimension_numbers<[1], [0], [0], [1], [0, 0, 1, 1], [], []>} : vector<8x32xf32>, vector<32x128xf32>, vector<8x128xf32> -> vector<8x128xf32>
    %c0_20 = arith.constant 0 : index
    %c0_21 = arith.constant 0 : index
    %21 = vector.load %arg9[%c0_20, %c0_21] : memref<1x128xf32, #tpu.memory_space<vmem>>, vector<1x128xf32>
    %22 = vector.broadcast %21 : vector<1x128xf32> to vector<8x128xf32>
    %23 = arith.addf %20, %22 : vector<8x128xf32>
    %24 = tpu.iota {dimensions = array<i32: 1>} : vector<8x128xi32>
    %c4_i32 = arith.constant 4 : i32
    %25 = vector.broadcast %c4_i32 : i32 to vector<8x128xi32>
    %26 = arith.cmpi slt, %24, %25 : vector<8x128xi32>
    %cst_22 = arith.constant -1.000000e+30 : f32
    %27 = vector.broadcast %cst_22 : f32 to vector<8x128xf32>
    %28 = arith.select %26, %23, %27 : vector<8x128xi1>, vector<8x128xf32>
    %cst_23 = arith.constant dense<0xFF800000> : vector<8xf32>
    %29 = vector.multi_reduction <maximumf>, %28, %cst_23 [1] : vector<8x128xf32> to vector<8xf32>
    %30 = vector.shape_cast %29 : vector<8xf32> to vector<8x1xf32>
    %31 = vector.broadcast %30 : vector<8x1xf32> to vector<8x128xf32>
    %32 = arith.subf %28, %31 : vector<8x128xf32>
    %33 = math.exp %32 : vector<8x128xf32>
    %cst_24 = arith.constant dense<0.000000e+00> : vector<8xf32>
    %34 = vector.multi_reduction <add>, %33, %cst_24 [1] : vector<8x128xf32> to vector<8xf32>
    %35 = vector.shape_cast %34 : vector<8xf32> to vector<8x1xf32>
    %36 = math.log %35 : vector<8x1xf32>
    %37 = arith.addf %30, %36 : vector<8x1xf32>
    %38 = vector.shape_cast %37 : vector<8x1xf32> to vector<8x1xf32>
    %39 = vector.broadcast %38 : vector<8x1xf32> to vector<8x128xf32>
    %40 = arith.select %26, %23, %39 : vector<8x128xi1>, vector<8x128xf32>
    %c0_25 = arith.constant 0 : index
    %c0_26 = arith.constant 0 : index
    %41 = vector.load %arg10[%c0_25, %c0_26] : memref<8x128xf32, #tpu.memory_space<vmem>>, vector<8x128xf32>
    tpu.vector_store %arg10[%c0_25, %c0_26], %40 {strides = array<i32>} : memref<8x128xf32, #tpu.memory_space<vmem>>, vector<8x128xf32>,
    return
  }
  func.func @transform_0(%arg0: i32) -> (i32, i32) {
    %c0_i32 = arith.constant 0 : i32
    %c0_i32_0 = arith.constant 0 : i32
    return %arg0, %c0_i32 : i32, i32
  }
  func.func @transform_1(%arg0: i32) -> (i32, i32) {
    %c0_i32 = arith.constant 0 : i32
    %c0_i32_0 = arith.constant 0 : i32
    return %arg0, %c0_i32 : i32, i32
  }
  func.func @transform_2(%arg0: i32) -> (i32, i32) {
    %c0_i32 = arith.constant 0 : i32
    %c0_i32_0 = arith.constant 0 : i32
    %c0_i32_1 = arith.constant 0 : i32
    return %c0_i32, %c0_i32_0 : i32, i32
  }
  func.func @transform_3(%arg0: i32) -> (i32, i32) {
    %c0_i32 = arith.constant 0 : i32
    %c0_i32_0 = arith.constant 0 : i32
    %c0_i32_1 = arith.constant 0 : i32
    return %c0_i32, %c0_i32_0 : i32, i32
  }
  func.func @transform_4(%arg0: i32) -> (i32, i32) {
    %c0_i32 = arith.constant 0 : i32
    %c0_i32_0 = arith.constant 0 : i32
    %c0_i32_1 = arith.constant 0 : i32
    return %c0_i32, %c0_i32_0 : i32, i32
  }
  func.func @transform_5(%arg0: i32) -> (i32, i32) {
    %c0_i32 = arith.constant 0 : i32
    %c0_i32_0 = arith.constant 0 : i32
    %c0_i32_1 = arith.constant 0 : i32
    return %c0_i32, %c0_i32_0 : i32, i32
  }
  func.func @transform_6(%arg0: i32) -> (i32, i32) {
    %c0_i32 = arith.constant 0 : i32
    %c0_i32_0 = arith.constant 0 : i32
    %c0_i32_1 = arith.constant 0 : i32
    return %c0_i32, %c0_i32_0 : i32, i32
  }
  func.func @transform_7(%arg0: i32) -> (i32, i32) {
    %c0_i32 = arith.constant 0 : i32
    %c0_i32_0 = arith.constant 0 : i32
    %c0_i32_1 = arith.constant 0 : i32
    return %c0_i32, %c0_i32_0 : i32, i32
  }
  func.func @transform_8(%arg0: i32) -> (i32, i32) {
    %c0_i32 = arith.constant 0 : i32
    %c0_i32_0 = arith.constant 0 : i32
    %c0_i32_1 = arith.constant 0 : i32
    return %c0_i32, %c0_i32_0 : i32, i32
  }
  func.func @transform_9(%arg0: i32) -> (i32, i32) {
    %c0_i32 = arith.constant 0 : i32
    %c0_i32_0 = arith.constant 0 : i32
    return %arg0, %c0_i32 : i32, i32
  }
}

</mosaic_0001>

<llo_original>
// kernel: _forward_padded.1
$region0: #{_forward_padded.1}
  #allocation0 [shape = 'u32[]', space=smem, size = 0x4, offset = 0x4, fixed_abs, tag = 'smem constant byte address 0x4 - core index']
  #allocation1 [shape = 'u32[144,128]{1,0:T(1,128)}', space=vmem, size = 0x12000, scoped, tag = 'internal scratch']
  %s0 = inlined_call_operand.hbm [shape: f32[8,24], index: 0, kind: input, shape index: {}]
  %s1 = inlined_call_operand.hbm [shape: f32[8,8], index: 1, kind: input, shape index: {}]
  %s2 = inlined_call_operand.hbm [shape: f32[24,32], index: 2, kind: input, shape index: {}]
  %s3 = inlined_call_operand.vmem [shape: f32[8,32], index: 3, kind: input, shape index: {}]
  %s4 = inlined_call_operand.vmem [shape: f32[1,32], index: 4, kind: input, shape index: {}]
  %s5 = inlined_call_operand.hbm [shape: f32[32,32], index: 5, kind: input, shape index: {}]
  %s6 = inlined_call_operand.vmem [shape: f32[1,32], index: 6, kind: input, shape index: {}]
  %s7 = inlined_call_operand.hbm [shape: f32[32,128], index: 7, kind: input, shape index: {}]
  %s8 = inlined_call_operand.vmem [shape: f32[1,128], index: 8, kind: input, shape index: {}]
  %s9 = inlined_call_operand.vmem [shape: f32[8,128], index: 9, kind: output, shape index: {}]
  %s10 = sld [smem:[#allocation0]]
  $region66: #{_forward_padded.1} parent=0
    _
  %s12 = ssub.s32 1, %s10
  %s13 = scalar_select 0, %s12, %s10
  $region1: #{_forward_padded.1} parent=0
    #allocation2 [shape = 'u8[4096]{0}', space=vmem, size = 0x1000, scoped, tag = 'input window, operand 0, single buffered']
    #allocation3 [shape = 's32[1]{0}', space=sflag, size = 0x4, scoped, tag = 'scoped memory for _forward_padded.1']
    #allocation4 [shape = 'u8[4096]{0}', space=vmem, size = 0x1000, scoped, tag = 'input window, operand 1, single buffered']
    #allocation5 [shape = 's32[1]{0}', space=sflag, size = 0x4, scoped, tag = 'scoped memory for _forward_padded.1']
    #allocation6 [shape = 'u8[12288]{0}', space=vmem, size = 0x3000, scoped, tag = 'input window, operand 2, single buffered']
    #allocation7 [shape = 'u8[16384]{0}', space=vmem, size = 0x4000, scoped, tag = 'input window, operand 5, single buffered']
    #allocation8 [shape = 's32[1]{0}', space=sflag, size = 0x4, scoped, tag = 'scoped memory for _forward_padded.1']
    #allocation9 [shape = 'u8[16384]{0}', space=vmem, size = 0x4000, scoped, tag = 'input window, operand 7, single buffered']
    %14 = vsyncpa [#allocation3], 0
    %15 = vsyncpa [#allocation5], 0
    %16 = vsyncpa [#allocation8], 0
    // Predicated region
    $region2: #{_forward_padded.1} parent=1 // pred_check
      _
    $region3: #{_forward_padded.1} parent=1 // pred_check_branch
      %18 = sbr.rel (0) target = $region5
    $region4: #{_forward_padded.1} parent=1 // pred_region
      %s20 = ssub.s32 128, 128
      %21 = vsyncadd [#allocation3], %s20
      %s23 = sshll.u32 [#allocation2], 4
      %s24 = int_to_ptr.vmem [resolvable:$true] %s23
      %26 = dma.hbm_to_vmem [thread:$0]  %s0, 128, %s24, [#allocation3]
    $region5: #{_forward_padded.1} parent=1 // pred_fallthru
      _
    // Predicated region
    $region6: #{_forward_padded.1} parent=1 // pred_check
      _
    $region7: #{_forward_padded.1} parent=1 // pred_check_branch
      %28 = sbr.rel (0) target = $region9
    $region8: #{_forward_padded.1} parent=1 // pred_region
      %s30 = ssub.s32 128, 128
      %31 = vsyncadd [#allocation5], %s30
      %s33 = sshll.u32 [#allocation4], 4
      %s34 = int_to_ptr.vmem [resolvable:$true] %s33
      %36 = dma.hbm_to_vmem [thread:$0]  %s1, 128, %s34, [#allocation5]
    $region9: #{_forward_padded.1} parent=1 // pred_fallthru
      _
    // Predicated region
    $region10: #{_forward_padded.1} parent=1 // pred_check
      _
    $region11: #{_forward_padded.1} parent=1 // pred_check_branch
      %38 = sbr.rel (0) target = $region13
    $region12: #{_forward_padded.1} parent=1 // pred_region
      %s40 = ssub.s32 384, 384
      %41 = vsyncadd [#allocation5], %s40
      %s42 = sshll.u32 [#allocation6], 4
      %s43 = int_to_ptr.vmem [resolvable:$true] %s42
      %48 = dma.hbm_to_vmem [thread:$0]  %s2, 384, %s43, [#allocation5], 128, 128, 8
    $region13: #{_forward_padded.1} parent=1 // pred_fallthru
      _
    // Predicated region
    $region14: #{_forward_padded.1} parent=1 // pred_check
      _
    $region15: #{_forward_padded.1} parent=1 // pred_check_branch
      %50 = sbr.rel (0) target = $region17
    $region16: #{_forward_padded.1} parent=1 // pred_region
      _
    $region17: #{_forward_padded.1} parent=1 // pred_fallthru
      _
    // Predicated region
    $region18: #{_forward_padded.1} parent=1 // pred_check
      _
    $region19: #{_forward_padded.1} parent=1 // pred_check_branch
      %52 = sbr.rel (0) target = $region21
    $region20: #{_forward_padded.1} parent=1 // pred_region
      _
    $region21: #{_forward_padded.1} parent=1 // pred_fallthru
      _
    // Predicated region
    $region22: #{_forward_padded.1} parent=1 // pred_check
      _
    $region23: #{_forward_padded.1} parent=1 // pred_check_branch
      %54 = sbr.rel (0) target = $region25
    $region24: #{_forward_padded.1} parent=1 // pred_region
      %s56 = ssub.s32 512, 512
      %57 = vsyncadd [#allocation8], %s56
      %s58 = sshll.u32 [#allocation7], 4
      %s59 = int_to_ptr.vmem [resolvable:$true] %s58
      %64 = dma.hbm_to_vmem [thread:$0]  %s5, 512, %s59, [#allocation8], 128, 128, 8
    $region25: #{_forward_padded.1} parent=1 // pred_fallthru
      _
    // Predicated region
    $region26: #{_forward_padded.1} parent=1 // pred_check
      _
    $region27: #{_forward_padded.1} parent=1 // pred_check_branch
      %66 = sbr.rel (0) target = $region29
    $region28: #{_forward_padded.1} parent=1 // pred_region
      _
    $region29: #{_forward_padded.1} parent=1 // pred_fallthru
      _
    // Predicated region
    $region30: #{_forward_padded.1} parent=1 // pred_check
      _
    $region31: #{_forward_padded.1} parent=1 // pred_check_branch
      %68 = sbr.rel (0) target = $region33
    $region32: #{_forward_padded.1} parent=1 // pred_region
      %s70 = ssub.s32 512, 512
      %71 = vsyncadd [#allocation8], %s70
      %s72 = sshll.u32 [#allocation9], 4
      %s73 = int_to_ptr.vmem [resolvable:$true] %s72
      %78 = dma.hbm_to_vmem [thread:$0]  %s7, 512, %s73, [#allocation8], 128, 128, 8
    $region33: #{_forward_padded.1} parent=1 // pred_fallthru
      _
    // Predicated region
    $region34: #{_forward_padded.1} parent=1 // pred_check
      _
    $region35: #{_forward_padded.1} parent=1 // pred_check_branch
      %80 = sbr.rel (0) target = $region37
    $region36: #{_forward_padded.1} parent=1 // pred_region
      _
    $region37: #{_forward_padded.1} parent=1 // pred_fallthru
      _
    // Predicated region
    $region38: #{_forward_padded.1} parent=1 // pred_check
      _
    $region39: #{_forward_padded.1} parent=1 // pred_check_branch
      %82 = sbr.rel (0) target = $region41
    $region40: #{_forward_padded.1} parent=1 // pred_region
      %83 = dma.done [#allocation3], 128
    $region41: #{_forward_padded.1} parent=1 // pred_fallthru
      _
    // Predicated region
    $region42: #{_forward_padded.1} parent=1 // pred_check
      _
    $region43: #{_forward_padded.1} parent=1 // pred_check_branch
      %85 = sbr.rel (0) target = $region45
    $region44: #{_forward_padded.1} parent=1 // pred_region
      %86 = dma.done [#allocation5], 128
    $region45: #{_forward_padded.1} parent=1 // pred_fallthru
      _
    // Predicated region
    $region46: #{_forward_padded.1} parent=1 // pred_check
      _
    $region47: #{_forward_padded.1} parent=1 // pred_check_branch
      %88 = sbr.rel (0) target = $region49
    $region48: #{_forward_padded.1} parent=1 // pred_region
      %89 = dma.done [#allocation5], 384
    $region49: #{_forward_padded.1} parent=1 // pred_fallthru
      _
    // Predicated region
    $region50: #{_forward_padded.1} parent=1 // pred_check
      _
    $region51: #{_forward_padded.1} parent=1 // pred_check_branch
      %91 = sbr.rel (0) target = $region53
    $region52: #{_forward_padded.1} parent=1 // pred_region
      %92 = dma.done [#allocation8], 512
    $region53: #{_forward_padded.1} parent=1 // pred_fallthru
      _
    // Predicated region
    $region54: #{_forward_padded.1} parent=1 // pred_check
      _
    $region55: #{_forward_padded.1} parent=1 // pred_check_branch
      %94 = sbr.rel (0) target = $region57
    $region56: #{_forward_padded.1} parent=1 // pred_region
      %95 = dma.done [#allocation8], 512
    $region57: #{_forward_padded.1} parent=1 // pred_fallthru
      _
    %v96 = vld [vmem:[#allocation2] sm:$0xff]
    %v97 = vld [vmem:[#allocation6] sm:$0xff]
    %v98 = vld [vmem:[#allocation6 + $0x8] sm:$0xff]
    %v99 = vld [vmem:[#allocation6 + $0x10] sm:$0xff]
    %v100 = vld [vmem:[#allocation4] sm:$0xff]
    %v101 = vld [vmem:[%s3] sm:$0xff]
    %vm102 = vcmask 64512
    %v104 = vsel %vm102, %v100, 0
    %106 = vmatprep.subr.mxu0 0.0
    %107 = vmatpush1.msra.mxu0 %v101
    %108 = vmatprep.subr.mxu0 0.0
    %109 = vmatpush1.msra.mxu0 0.0
    %110 = vmatprep.subr.mxu0 0.0
    %111 = vmatpush1.msra.mxu0 0.0
    %112 = vmatprep.subr.mxu0 0.0
    %113 = vmatpush1.msra.mxu0 0.0
    %114 = vmatprep.subr.mxu0 0.0
    %115 = vmatpush1.msra.mxu0 0.0
    %116 = vmatprep.subr.mxu0 0.0
    %117 = vmatpush1.msra.mxu0 0.0
    %118 = vmatprep.subr.mxu0 0.0
    %119 = vmatpush1.msra.mxu0 0.0
    %120 = vmatprep.subr.mxu0 0.0
    %121 = vmatpush1.msra.mxu0 0.0
    %122 = vmatprep.subr.mxu0 0.0
    %123 = vmatpush1.msra.mxu0 0.0
    %124 = vmatprep.subr.mxu0 0.0
    %125 = vmatpush1.msra.mxu0 0.0
    %126 = vmatprep.subr.mxu0 0.0
    %127 = vmatpush1.msra.mxu0 0.0
    %128 = vmatprep.subr.mxu0 0.0
    %129 = vmatpush1.msra.mxu0 0.0
    %130 = vmatprep.subr.mxu0 0.0
    %131 = vmatpush1.msra.mxu0 0.0
    %132 = vmatprep.subr.mxu0 0.0
    %133 = vmatpush1.msra.mxu0 0.0
    %134 = vmatprep.subr.mxu0 0.0
    %135 = vmatpush1.msra.mxu0 0.0
    %136 = vmatprep.subr.mxu0 0.0
    %137 = vmatpush1.msra.mxu0 0.0
    %138 = vmatprep.subr.mxu0 0.0
    %139 = vmatpush1.msra.mxu0 0.0
    %140 = vmatprep.subr.mxu0 0.0
    %141 = vmatpush1.msra.mxu0 0.0
    %142 = vmatprep.subr.mxu0 0.0
    %143 = vmatpush1.msra.mxu0 0.0
    %144 = vmatprep.subr.mxu0 0.0
    %145 = vmatpush1.msra.mxu0 0.0
    %146 = vmatprep.subr.mxu0 0.0
    %147 = vmatpush1.msra.mxu0 0.0
    %148 = vmatprep.subr.mxu0 0.0
    %149 = vmatpush1.msra.mxu0 0.0
    %150 = vmatprep.subr.mxu0 0.0
    %151 = vmatpush1.msra.mxu0 0.0
    %152 = vmatprep.subr.mxu0 0.0
    %153 = vmatpush1.msra.mxu0 0.0
    %154 = vmatprep.subr.mxu0 0.0
    %155 = vmatpush1.msra.mxu0 0.0
    %156 = vmatprep.subr.mxu0 0.0
    %157 = vmatpush1.msra.mxu0 0.0
    %158 = vmatprep.subr.mxu0 0.0
    %159 = vmatpush1.msra.mxu0 0.0
    %160 = vmatprep.subr.mxu0 0.0
    %161 = vmatpush1.msra.mxu0 0.0
    %162 = vmatprep.subr.mxu0 0.0
    %163 = vmatpush1.msra.mxu0 0.0
    %164 = vmatprep.subr.mxu0 0.0
    %165 = vmatpush1.msra.mxu0 0.0
    %166 = vmatprep.subr.mxu0 0.0
    %167 = vmatpush1.msra.mxu0 0.0
    %168 = vmatprep.subr.mxu0 0.0
    %169 = vmatpush1.msra.mxu0 0.0
    %170 = vmatprep.mubr.f32.mxu0 0.0
    %171 = vmatmul.mubr.f32.gmra.mrb[0].mxu0 %v104
    %v172 = vpop.f32.mrb[0].mxu0
    %v173 = vadd.f32 0.0, %v172
    %v174 = vpop.f32.mrb[0].mxu0
    %175 = vdwg.mxu0
    %vm176 = vcmask 195584
    %v178 = vsel %vm176, %v96, 0
    %180 = vmatprep.subr.mxu0 0.0
    %181 = vmatpush1.msra.mxu0 %v97
    %182 = vmatprep.subr.mxu0 0.0
    %183 = vmatpush1.msra.mxu0 %v98
    %184 = vmatprep.subr.mxu0 0.0
    %185 = vmatpush1.msra.mxu0 %v99
    %186 = vmatprep.subr.mxu0 0.0
    %187 = vmatpush1.msra.mxu0 0.0
    %188 = vmatprep.subr.mxu0 0.0
    %189 = vmatpush1.msra.mxu0 0.0
    %190 = vmatprep.subr.mxu0 0.0
    %191 = vmatpush1.msra.mxu0 0.0
    %192 = vmatprep.subr.mxu0 0.0
    %193 = vmatpush1.msra.mxu0 0.0
    %194 = vmatprep.subr.mxu0 0.0
    %195 = vmatpush1.msra.mxu0 0.0
    %196 = vmatprep.subr.mxu0 0.0
    %197 = vmatpush1.msra.mxu0 0.0
    %198 = vmatprep.subr.mxu0 0.0
    %199 = vmatpush1.msra.mxu0 0.0
    %200 = vmatprep.subr.mxu0 0.0
    %201 = vmatpush1.msra.mxu0 0.0
    %202 = vmatprep.subr.mxu0 0.0
    %203 = vmatpush1.msra.mxu0 0.0
    %204 = vmatprep.subr.mxu0 0.0
    %205 = vmatpush1.msra.mxu0 0.0
    %206 = vmatprep.subr.mxu0 0.0
    %207 = vmatpush1.msra.mxu0 0.0
    %208 = vmatprep.subr.mxu0 0.0
    %209 = vmatpush1.msra.mxu0 0.0
    %210 = vmatprep.subr.mxu0 0.0
    %211 = vmatpush1.msra.mxu0 0.0
    %212 = vmatprep.subr.mxu0 0.0
    %213 = vmatpush1.msra.mxu0 0.0
    %214 = vmatprep.subr.mxu0 0.0
    %215 = vmatpush1.msra.mxu0 0.0
    %216 = vmatprep.subr.mxu0 0.0
    %217 = vmatpush1.msra.mxu0 0.0
    %218 = vmatprep.subr.mxu0 0.0
    %219 = vmatpush1.msra.mxu0 0.0
    %220 = vmatprep.subr.mxu0 0.0
    %221 = vmatpush1.msra.mxu0 0.0
    %222 = vmatprep.subr.mxu0 0.0
    %223 = vmatpush1.msra.mxu0 0.0
    %224 = vmatprep.subr.mxu0 0.0
    %225 = vmatpush1.msra.mxu0 0.0
    %226 = vmatprep.subr.mxu0 0.0
    %227 = vmatpush1.msra.mxu0 0.0
    %228 = vmatprep.subr.mxu0 0.0
    %229 = vmatpush1.msra.mxu0 0.0
    %230 = vmatprep.subr.mxu0 0.0
    %231 = vmatpush1.msra.mxu0 0.0
    %232 = vmatprep.subr.mxu0 0.0
    %233 = vmatpush1.msra.mxu0 0.0
    %234 = vmatprep.subr.mxu0 0.0
    %235 = vmatpush1.msra.mxu0 0.0
    %236 = vmatprep.subr.mxu0 0.0
    %237 = vmatpush1.msra.mxu0 0.0
    %238 = vmatprep.subr.mxu0 0.0
    %239 = vmatpush1.msra.mxu0 0.0
    %240 = vmatprep.subr.mxu0 0.0
    %241 = vmatpush1.msra.mxu0 0.0
    %242 = vmatprep.subr.mxu0 0.0
    %243 = vmatpush1.msra.mxu0 0.0
    %244 = vmatprep.mubr.f32.mxu0 0.0
    %245 = vmatmul.mubr.f32.gmra.mrb[0].mxu0 %v178
    %v246 = vpop.f32.mrb[0].mxu0
    %v247 = vadd.f32 %v173, %v246
    %v248 = vpop.f32.mrb[0].mxu0
    %249 = vdwg.mxu0
    %v250 = vld [vmem:[%s4] sm:$0x1]
    %v252 = vlaneseq
    %v253 = vshrl.u32 %v252, 7
    %v254 = vsub.s32 0, %v253
    %v255 = vrot.slane %v250, %v254
    %v257 = vadd.f32 %v247, %v255
    %v258 = vmax.f32 %v257, 0.0
    %v259 = vld [vmem:[#allocation7] sm:$0xff]
    %v260 = vld [vmem:[#allocation7 + $0x8] sm:$0xff]
    %v261 = vld [vmem:[#allocation7 + $0x10] sm:$0xff]
    %v262 = vld [vmem:[#allocation7 + $0x18] sm:$0xff]
    %v263 = vld [vmem:[%s6] sm:$0x1]
    %v265 = vlaneseq
    %v266 = vshrl.u32 %v265, 7
    %v267 = vsub.s32 0, %v266
    %v268 = vrot.slane %v263, %v267
    %vm270 = vcmask 261120
    %v272 = vsel %vm270, %v258, 0
    %274 = vmatprep.subr.mxu0 0.0
    %275 = vmatpush1.msra.mxu0 %v259
    %276 = vmatprep.subr.mxu0 0.0
    %277 = vmatpush1.msra.mxu0 %v260
    %278 = vmatprep.subr.mxu0 0.0
    %279 = vmatpush1.msra.mxu0 %v261
    %280 = vmatprep.subr.mxu0 0.0
    %281 = vmatpush1.msra.mxu0 %v262
    %282 = vmatprep.subr.mxu0 0.0
    %283 = vmatpush1.msra.mxu0 0.0
    %284 = vmatprep.subr.mxu0 0.0
    %285 = vmatpush1.msra.mxu0 0.0
    %286 = vmatprep.subr.mxu0 0.0
    %287 = vmatpush1.msra.mxu0 0.0
    %288 = vmatprep.subr.mxu0 0.0
    %289 = vmatpush1.msra.mxu0 0.0
    %290 = vmatprep.subr.mxu0 0.0
    %291 = vmatpush1.msra.mxu0 0.0
    %292 = vmatprep.subr.mxu0 0.0
    %293 = vmatpush1.msra.mxu0 0.0
    %294 = vmatprep.subr.mxu0 0.0
    %295 = vmatpush1.msra.mxu0 0.0
    %296 = vmatprep.subr.mxu0 0.0
    %297 = vmatpush1.msra.mxu0 0.0
    %298 = vmatprep.subr.mxu0 0.0
    %299 = vmatpush1.msra.mxu0 0.0
    %300 = vmatprep.subr.mxu0 0.0
    %301 = vmatpush1.msra.mxu0 0.0
    %302 = vmatprep.subr.mxu0 0.0
    %303 = vmatpush1.msra.mxu0 0.0
    %304 = vmatprep.subr.mxu0 0.0
    %305 = vmatpush1.msra.mxu0 0.0
    %306 = vmatprep.subr.mxu0 0.0
    %307 = vmatpush1.msra.mxu0 0.0
    %308 = vmatprep.subr.mxu0 0.0
    %309 = vmatpush1.msra.mxu0 0.0
    %310 = vmatprep.subr.mxu0 0.0
    %311 = vmatpush1.msra.mxu0 0.0
    %312 = vmatprep.subr.mxu0 0.0
    %313 = vmatpush1.msra.mxu0 0.0
    %314 = vmatprep.subr.mxu0 0.0
    %315 = vmatpush1.msra.mxu0 0.0
    %316 = vmatprep.subr.mxu0 0.0
    %317 = vmatpush1.msra.mxu0 0.0
    %318 = vmatprep.subr.mxu0 0.0
    %319 = vmatpush1.msra.mxu0 0.0
    %320 = vmatprep.subr.mxu0 0.0
    %321 = vmatpush1.msra.mxu0 0.0
    %322 = vmatprep.subr.mxu0 0.0
    %323 = vmatpush1.msra.mxu0 0.0
    %324 = vmatprep.subr.mxu0 0.0
    %325 = vmatpush1.msra.mxu0 0.0
    %326 = vmatprep.subr.mxu0 0.0
    %327 = vmatpush1.msra.mxu0 0.0
    %328 = vmatprep.subr.mxu0 0.0
    %329 = vmatpush1.msra.mxu0 0.0
    %330 = vmatprep.subr.mxu0 0.0
    %331 = vmatpush1.msra.mxu0 0.0
    %332 = vmatprep.subr.mxu0 0.0
    %333 = vmatpush1.msra.mxu0 0.0
    %334 = vmatprep.subr.mxu0 0.0
    %335 = vmatpush1.msra.mxu0 0.0
    %336 = vmatprep.subr.mxu0 0.0
    %337 = vmatpush1.msra.mxu0 0.0
    %338 = vmatprep.mubr.f32.mxu0 0.0
    %339 = vmatmul.mubr.f32.gmra.mrb[0].mxu0 %v272
    %v340 = vpop.f32.mrb[0].mxu0
    %v341 = vadd.f32 %v268, %v340
    %v342 = vpop.f32.mrb[0].mxu0
    %343 = vdwg.mxu0
    %v344 = vmax.f32 %v341, 0.0
    %v345 = vld [vmem:[#allocation9] sm:$0xff]
    %v346 = vld [vmem:[#allocation9 + $0x8] sm:$0xff]
    %v347 = vld [vmem:[#allocation9 + $0x10] sm:$0xff]
    %v348 = vld [vmem:[#allocation9 + $0x18] sm:$0xff]
    %v349 = vld [vmem:[%s8] sm:$0x1]
    %v351 = vlaneseq
    %v352 = vshrl.u32 %v351, 7
    %v353 = vsub.s32 0, %v352
    %v354 = vrot.slane %v349, %v353
    %v357 = vsel %vm270, %v344, 0
    %359 = vmatprep.subr.mxu0 0.0
    %360 = vmatpush1.msra.mxu0 %v345
    %361 = vmatprep.subr.mxu0 0.0
    %362 = vmatpush1.msra.mxu0 %v346
    %363 = vmatprep.subr.mxu0 0.0
    %364 = vmatpush1.msra.mxu0 %v347
    %365 = vmatprep.subr.mxu0 0.0
    %366 = vmatpush1.msra.mxu0 %v348
    %367 = vmatprep.subr.mxu0 0.0
    %368 = vmatpush1.msra.mxu0 0.0
    %369 = vmatprep.subr.mxu0 0.0
    %370 = vmatpush1.msra.mxu0 0.0
    %371 = vmatprep.subr.mxu0 0.0
    %372 = vmatpush1.msra.mxu0 0.0
    %373 = vmatprep.subr.mxu0 0.0
    %374 = vmatpush1.msra.mxu0 0.0
    %375 = vmatprep.subr.mxu0 0.0
    %376 = vmatpush1.msra.mxu0 0.0
    %377 = vmatprep.subr.mxu0 0.0
    %378 = vmatpush1.msra.mxu0 0.0
    %379 = vmatprep.subr.mxu0 0.0
    %380 = vmatpush1.msra.mxu0 0.0
    %381 = vmatprep.subr.mxu0 0.0
    %382 = vmatpush1.msra.mxu0 0.0
    %383 = vmatprep.subr.mxu0 0.0
    %384 = vmatpush1.msra.mxu0 0.0
    %385 = vmatprep.subr.mxu0 0.0
    %386 = vmatpush1.msra.mxu0 0.0
    %387 = vmatprep.subr.mxu0 0.0
    %388 = vmatpush1.msra.mxu0 0.0
    %389 = vmatprep.subr.mxu0 0.0
    %390 = vmatpush1.msra.mxu0 0.0
    %391 = vmatprep.subr.mxu0 0.0
    %392 = vmatpush1.msra.mxu0 0.0
    %393 = vmatprep.subr.mxu0 0.0
    %394 = vmatpush1.msra.mxu0 0.0
    %395 = vmatprep.subr.mxu0 0.0
    %396 = vmatpush1.msra.mxu0 0.0
    %397 = vmatprep.subr.mxu0 0.0
    %398 = vmatpush1.msra.mxu0 0.0
    %399 = vmatprep.subr.mxu0 0.0
    %400 = vmatpush1.msra.mxu0 0.0
    %401 = vmatprep.subr.mxu0 0.0
    %402 = vmatpush1.msra.mxu0 0.0
    %403 = vmatprep.subr.mxu0 0.0
    %404 = vmatpush1.msra.mxu0 0.0
    %405 = vmatprep.subr.mxu0 0.0
    %406 = vmatpush1.msra.mxu0 0.0
    %407 = vmatprep.subr.mxu0 0.0
    %408 = vmatpush1.msra.mxu0 0.0
    %409 = vmatprep.subr.mxu0 0.0
    %410 = vmatpush1.msra.mxu0 0.0
    %411 = vmatprep.subr.mxu0 0.0
    %412 = vmatpush1.msra.mxu0 0.0
    %413 = vmatprep.subr.mxu0 0.0
    %414 = vmatpush1.msra.mxu0 0.0
    %415 = vmatprep.subr.mxu0 0.0
    %416 = vmatpush1.msra.mxu0 0.0
    %417 = vmatprep.subr.mxu0 0.0
    %418 = vmatpush1.msra.mxu0 0.0
    %419 = vmatprep.subr.mxu0 0.0
    %420 = vmatpush1.msra.mxu0 0.0
    %421 = vmatprep.subr.mxu0 0.0
    %422 = vmatpush1.msra.mxu0 0.0
    %423 = vmatprep.mubr.f32.mxu0 0.0
    %424 = vmatmul.mubr.f32.gmra.mrb[0].mxu0 %v357
    %v425 = vpop.f32.mrb[0].mxu0
    %v426 = vadd.f32 %v354, %v425
    %v427 = vpop.f32.mrb[0].mxu0
    %428 = vdwg.mxu0
    %v429 = vlaneseq
    %v430 = vand.u32 %v429, 127
    %vm431 = vcmp.lt.s32.totalorder %v430, 4
    %v432 = vsel %vm431, %v426, -1e+30
    %433 = vmax.xlane.f32.xlu0 %v432
    %v434 = vpop.xlane.xlu0 %433
    %v435 = vsub.f32 %v432, %v434
    %v436 = vmul.f32 %v435, 1.442695
    %v437 = vpow.pop %v436
    %438 = vadd.xlane.f32.xlu0 %v437
    %v439 = vpop.xlane.xlu0 %438
    %v440 = vlog2.pop %v439
    %v441 = vmul.f32 %v440, 0.6931472
    %v442 = vadd.f32 %v434, %v441
    %v443 = vsel %vm431, %v426, %v442
    %444 = vst [vmem:[%s9] sm:$0xff] %v443
    // Predicated region
    $region58: #{_forward_padded.1} parent=1 // pred_check
      _
    $region59: #{_forward_padded.1} parent=1 // pred_check_branch
      %446 = sbr.rel (0) target = $region61
    $region60: #{_forward_padded.1} parent=1 // pred_region
      _
    $region61: #{_forward_padded.1} parent=1 // pred_fallthru
      _
    // Predicated region
    $region62: #{_forward_padded.1} parent=1 // pred_check
      _
    $region63: #{_forward_padded.1} parent=1 // pred_check_branch
      %448 = sbr.rel (0) target = $region65
    $region64: #{_forward_padded.1} parent=1 // pred_region
      _
    $region65: #{_forward_padded.1} parent=1 // pred_fallthru
      _
    %449 = vsyncpa [#allocation3], 1
    %450 = vsyncpa [#allocation5], 1
    %451 = vsyncpa [#allocation8], 1

</llo_original>
